<compile_context>
chip_gen: v7x
topology: tpu7x:2x2x1
jax: 0.10.0
libtpu: 0.0.40
codegen_flags: <defaults>
</compile_context>

<pallas_src>
import numpy as np
import jax
import jax.numpy as jnp
from jax.experimental import pallas as pl
from jax.experimental.pallas import tpu as pltpu

# Host-side "masked out" fill for the additive pool mask.  Safe because every
# 5x5 pool window lies entirely inside the valid Hc x Wc region (guaranteed by
# the Hp/Wp construction), so a window max never resolves to this value.
_NEG = -3.0e38


def _make_rcab_kernel(H, W, Cin, Cmid, Cout, Ch, Hp, Wp, offs, res_scale):
    S = H * W
    HpWp = Hp * Wp
    (o_w1, o_b1, o_w2, o_b2, o_w3, o_b3,
     o_wc1, o_bc1, o_wc2, o_bc2, o_valid, o_pool) = offs

    def kernel(x_ref, s_ref, out_ref):
        x = x_ref[...]                                     # (Cin, S)

        # ---- packed parameter/mask slab (static slices, single DMA upstream)
        w1   = s_ref[o_w1:o_w1 + Cmid, :Cin]               # (Cmid, Cin)
        b1   = s_ref[o_b1:o_b1 + Cmid, :1]                 # (Cmid, 1)
        w2f  = s_ref[o_w2:o_w2 + Cmid, :9 * Cmid]          # (Cmid, 9*Cmid)
        b2   = s_ref[o_b2:o_b2 + Cmid, :1]                 # (Cmid, 1)
        w3   = s_ref[o_w3:o_w3 + Cout, :Cmid]              # (Cout, Cmid)
        b3   = s_ref[o_b3:o_b3 + Cout, :1]                 # (Cout, 1)
        wc1t = s_ref[o_wc1:o_wc1 + Cout, :Ch]              # (Cout, Ch) = wc1.T
        bc1r = s_ref[o_bc1:o_bc1 + 1, :Ch]                 # (1, Ch)
        wc2  = s_ref[o_wc2:o_wc2 + Cout, :Ch]              # (Cout, Ch)
        bc2  = s_ref[o_bc2:o_bc2 + Cout, :1]               # (Cout, 1)
        vinv = s_ref[o_valid:o_valid + 1, :]               # (1, S), valid * 1/(Hc*Wc)

        # ---- conv1 (1x1) + ReLU
        y1 = jnp.maximum(
            jnp.dot(w1, x, preferred_element_type=jnp.float32) + b1, 0.0)   # (Cmid, S)

        # ---- conv2 (3x3 valid) + ReLU: ONE fused matmul over an im2col stack
        # of the 9 lane-rolled taps.  shifted_t[p] = y1[p + s_t]; wraparound
        # only touches positions outside the valid Hc x Wc region.
        taps = [y1]
        for t in range(1, 9):
            s = (t // 3) * W + (t % 3)
            taps.append(pltpu.roll(y1, S - s, axis=1))
        stack = jnp.concatenate(taps, axis=0)               # (9*Cmid, S)
        y2 = jnp.maximum(
            jnp.dot(w2f, stack, preferred_element_type=jnp.float32) + b2, 0.0)

        # ---- conv3 (1x1) over the full image (off the CA critical path)
        y3 = jnp.dot(w3, y2, preferred_element_type=jnp.float32) + b3       # (Cout, S)

        # ---- CALayer.  GAP from y2 (exact: conv3 is 1x1-linear, bias const
        # over the valid region):  gap3 = w3 @ mean_valid(y2) + b3.
        gap2 = jnp.sum(y2 * vinv, axis=1, keepdims=True)                    # (Cmid, 1)
        gap3 = jnp.dot(w3, gap2, preferred_element_type=jnp.float32) + b3   # (Cout, 1)
        # softmax over channels (sublanes)
        mx = jnp.max(gap3, axis=0, keepdims=True)
        e = jnp.exp(gap3 - mx)
        sm = e * pl.reciprocal(jnp.sum(e, axis=0, keepdims=True), approx=True)
        # CA MLP off the MXU: broadcast-multiply + tiny cross reductions.
        h = jnp.maximum(jnp.sum(wc1t * sm, axis=0, keepdims=True) + bc1r, 0.0)  # (1, Ch)
        z = jnp.sum(wc2 * h, axis=1, keepdims=True) + bc2                       # (Cout, 1)
        att = pl.reciprocal(1.0 + jnp.exp(-z), approx=True) * res_scale         # sigmoid*scale

        y4 = y3 * att                                        # (Cout, S)

        # ---- MaxPool2d(5, 5): additive window masks (0 / -3e38), one store.
        maxima = []
        for o in range(HpWp):
            pm = s_ref[o_pool + o:o_pool + o + 1, :]         # (1, S)
            maxima.append(jnp.max(y4 + pm, axis=1, keepdims=True))          # (Cout, 1)
        out_ref[...] = jnp.concatenate(maxima, axis=1)       # (Cout, HpWp), single store

    return kernel


def rcab_forward(x, params, res_scale=1.0):
    """Pallas RCAB forward.  x: (B, Cin, H, W) float32 (NCHW, as in PyTorch)."""
    w1, b1, w2, b2, w3, b3, wc1, bc1, wc2, bc2 = params
    B, Cin, H, W = x.shape
    Cmid = w1.shape[0]
    Cout = w3.shape[0]
    Ch = wc1.shape[0]
    S = H * W
    Hc, Wc = H - 2, W - 2
    Hp, Wp = (Hc - 5) // 5 + 1, (Wc - 5) // 5 + 1
    HpWp = Hp * Wp
    inv_n = 1.0 / float(Hc * Wc)

    # Roll-wraparound safety for the 3x3 valid conv: furthest tap read from a
    # valid output position must stay inside the flattened image.
    assert (Hc - 1) * W + (Wc - 1) + 2 * W + 2 <= S - 1
    # Pool windows must lie inside the valid region (makes the -3e38 fill safe).
    assert 5 * Hp <= Hc and 5 * Wp <= Wc
    # NOTE(v7x): whole-image (C, S) blocks + all f32 intermediates live per
    # step; at these sizes this is a few hundred KiB.  For large H*W split
    # into row strips with a 2-row halo (64 MiB VMEM per TC on v7x).

    # NCHW already has channels leading per image: just flatten spatial.
    x2d = x.reshape(B, Cin, S).astype(jnp.float32)

    # --- weights arranged to LEFT-multiply (C, S) activations ---
    w1m = w1[:, :, 0, 0].astype(jnp.float32)                                 # (Cmid, Cin)
    # Fused conv2 weight: W[o, t*Cmid + i] = w2[o, i, t//3, t%3]
    w2f = jnp.transpose(w2, (0, 2, 3, 1)).reshape(Cmid, 9 * Cmid).astype(jnp.float32)
    w3m = w3[:, :, 0, 0].astype(jnp.float32)                                 # (Cout, Cmid)
    wc1t = jnp.transpose(wc1[:, :, 0, 0]).astype(jnp.float32)                # (Cout, Ch)
    wc2m = wc2[:, :, 0, 0].astype(jnp.float32)                               # (Cout, Ch)
    b1c = b1.astype(jnp.float32)[:, None]
    b2c = b2.astype(jnp.float32)[:, None]
    b3c = b3.astype(jnp.float32)[:, None]
    bc1r = bc1.astype(jnp.float32)[None, :]                                  # (1, Ch)
    bc2c = bc2.astype(jnp.float32)[:, None]                                  # (Cout, 1)

    # --- constant masks over the flattened (row-major, stride W) spatial axis
    vm = np.zeros((H, W), np.float32)
    vm[:Hc, :Wc] = inv_n                                   # GAP weight folded in
    validinv = jnp.asarray(vm.reshape(1, S))
    pm = np.full((HpWp, H, W), _NEG, np.float32)           # additive pool mask
    for pi in range(Hp):
        for qi in range(Wp):
            pm[pi * Wp + qi, 5 * pi:5 * pi + 5, 5 * qi:5 * qi + 5] = 0.0
    pool_add = jnp.asarray(pm.reshape(HpWp, S))

    # --- pack every weight/bias/mask into ONE (rows, S) f32 slab: one DMA ---
    pieces = [w1m, b1c, w2f, b2c, w3m, b3c, wc1t, bc1r, wc2m, bc2c,
              validinv, pool_add]
    offs, r = [], 0
    for p in pieces:
        offs.append(r)
        r += p.shape[0]
    slab = jnp.concatenate(
        [jnp.pad(p, ((0, 0), (0, S - p.shape[1]))) for p in pieces], axis=0)

    kernel = _make_rcab_kernel(H, W, Cin, Cmid, Cout, Ch, Hp, Wp,
                               tuple(offs), float(res_scale))

    grid_spec = pltpu.PrefetchScalarGridSpec(
        num_scalar_prefetch=0,
        grid=(B,),
        in_specs=[
            pl.BlockSpec((None, Cin, S), lambda b: (b, 0, 0)),   # per-image block
            pl.BlockSpec(slab.shape, lambda b: (0, 0)),          # packed params/masks
        ],
        out_specs=pl.BlockSpec((None, Cout, HpWp), lambda b: (b, 0, 0)),
    )

    out = pl.pallas_call(
        kernel,
        out_shape=jax.ShapeDtypeStruct((B, Cout, HpWp), jnp.float32),
        grid_spec=grid_spec,
        compiler_params=pltpu.CompilerParams(
            dimension_semantics=("parallel",)),    # one image per TC on v7x
    )(x2d, slab)

    # (B, Cout, Hp*Wp) is already NCHW-ordered: reshape + torch-style squeeze.
    res = out.reshape(B, Cout, Hp, Wp)
    return jnp.squeeze(res)


def init_params(key, in_channel, out_channel):
    """Deterministic synthetic parameters with the shapes from RCAB.__init__."""
    cm = in_channel // 2
    ch = out_channel // 2
    ks = jax.random.split(key, 10)

    def w(k, shape, scale=0.3):
        return (scale * jax.random.normal(k, shape)).astype(jnp.float32)

    return (
        w(ks[0], (cm, in_channel, 1, 1)),  w(ks[1], (cm,), 0.1),           # conv1
        w(ks[2], (cm, cm, 3, 3)),          w(ks[3], (cm,), 0.1),           # conv2
        w(ks[4], (out_channel, cm, 1, 1)), w(ks[5], (out_channel,), 0.1),  # conv3
        w(ks[6], (ch, out_channel, 1, 1)), w(ks[7], (ch,), 0.1),           # CA fc1
        w(ks[8], (out_channel, ch, 1, 1)), w(ks[9], (out_channel,), 0.1),  # CA fc2
    )


def ref_forward(x, params, res_scale=1.0):
    """Pure-JAX reference of the PyTorch forward (NCHW)."""
    w1, b1, w2, b2, w3, b3, wc1, bc1, wc2, bc2 = params
    y1 = jax.nn.relu(jnp.einsum('bihw,oi->bohw', x, w1[:, :, 0, 0])
                     + b1[None, :, None, None])
    B, Cm, H, W = y1.shape
    Hc, Wc = H - 2, W - 2
    y2 = jnp.zeros((B, w2.shape[0], Hc, Wc), jnp.float32) + b2[None, :, None, None]
    for dh in range(3):
        for dw in range(3):
            y2 = y2 + jnp.einsum('bihw,oi->bohw',
                                 y1[:, :, dh:dh + Hc, dw:dw + Wc], w2[:, :, dh, dw])
    y2 = jax.nn.relu(y2)
    y3 = jnp.einsum('bihw,oi->bohw', y2, w3[:, :, 0, 0]) + b3[None, :, None, None]
    gap = jnp.mean(y3, axis=(2, 3), keepdims=True)
    sm = jax.nn.softmax(gap, axis=1)
    h = jax.nn.relu(jnp.einsum('bihw,oi->bohw', sm, wc1[:, :, 0, 0])
                    + bc1[None, :, None, None])
    att = jax.nn.sigmoid(jnp.einsum('bihw,oi->bohw', h, wc2[:, :, 0, 0])
                         + bc2[None, :, None, None])
    res = y3 * att * res_scale
    Hp, Wp = (Hc - 5) // 5 + 1, (Wc - 5) // 5 + 1
    r = res[:, :, :Hp * 5, :Wp * 5].reshape(B, res.shape[1], Hp, 5, Wp, 5)
    return jnp.squeeze(jnp.max(r, axis=(3, 5)))


if __name__ == "__main__":
    key = jax.random.PRNGKey(0)
    kx, kp = jax.random.split(key)

    B, Cin, Cout, H, W = 2, 4, 4, 16, 16
    x = jax.random.normal(kx, (B, Cin, H, W), dtype=jnp.float32)
    params = init_params(kp, Cin, Cout)

    out = rcab_forward(x, params, res_scale=1.0)
    out = jax.block_until_ready(out)

    ref = ref_forward(x, params, res_scale=1.0)
    # Softmax/sigmoid use the EUP approximate reciprocal (pl.reciprocal(approx=True)),
    # so use a slightly relaxed relative tolerance.
    np.testing.assert_allclose(np.asarray(out), np.asarray(ref), rtol=1e-2, atol=1e-3)

    print("KERNEL_OK")
</pallas_src>

<mosaic_0001>
module attributes {stable_mosaic.version = 11 : i64} {
  func.func @kernel(%arg0: i32, %arg1: memref<1x4x256xf32, #tpu.memory_space<vmem>>, %arg2: memref<34x256xf32, #tpu.memory_space<vmem>>, %arg3: memref<1x4x4xf32, #tpu.memory_space<vmem>>) attributes {dimension_semantics = [#tpu.dimension_semantics<parallel>], iteration_bounds = array<i64: 2>, scalar_prefetch = 0 : i64, scratch_operands = 0 : i64, tpu.core_type = #tpu.core_type<tc>, window_params = [{transform_indices = @transform_0, window_bounds = array<i64: 1, 4, 256>}, {pipeline_mode = #tpu.pipeline_mode<synchronous>, transform_indices = @transform_1, window_bounds = array<i64: 34, 256>}, {transform_indices = @transform_2, window_bounds = array<i64: 1, 4, 4>}]} {
    %c0 = arith.constant 0 : index
    %c0_0 = arith.constant 0 : index
    %c0_1 = arith.constant 0 : index
    %0 = vector.load %arg1[%c0, %c0_0, %c0_1] : memref<1x4x256xf32, #tpu.memory_space<vmem>>, vector<1x4x256xf32>
    %1 = vector.shape_cast %0 : vector<1x4x256xf32> to vector<4x256xf32>
    %c0_2 = arith.constant 0 : index
    %c0_3 = arith.constant 0 : index
    %2 = vector.load %arg2[%c0_2, %c0_3] : memref<34x256xf32, #tpu.memory_space<vmem>>, vector<2x4xf32>
    %c2 = arith.constant 2 : index
    %c0_4 = arith.constant 0 : index
    %3 = vector.load %arg2[%c2, %c0_4] : memref<34x256xf32, #tpu.memory_space<vmem>>, vector<2x1xf32>
    %c4 = arith.constant 4 : index
    %c0_5 = arith.constant 0 : index
    %4 = vector.load %arg2[%c4, %c0_5] : memref<34x256xf32, #tpu.memory_space<vmem>>, vector<2x18xf32>
    %c6 = arith.constant 6 : index
    %c0_6 = arith.constant 0 : index
    %5 = vector.load %arg2[%c6, %c0_6] : memref<34x256xf32, #tpu.memory_space<vmem>>, vector<2x1xf32>
    %c8 = arith.constant 8 : index
    %c0_7 = arith.constant 0 : index
    %6 = vector.load %arg2[%c8, %c0_7] : memref<34x256xf32, #tpu.memory_space<vmem>>, vector<4x2xf32>
    %c12 = arith.constant 12 : index
    %c0_8 = arith.constant 0 : index
    %7 = vector.load %arg2[%c12, %c0_8] : memref<34x256xf32, #tpu.memory_space<vmem>>, vector<4x1xf32>
    %c16 = arith.constant 16 : index
    %c0_9 = arith.constant 0 : index
    %8 = vector.load %arg2[%c16, %c0_9] : memref<34x256xf32, #tpu.memory_space<vmem>>, vector<4x2xf32>
    %c20 = arith.constant 20 : index
    %c0_10 = arith.constant 0 : index
    %9 = vector.load %arg2[%c20, %c0_10] : memref<34x256xf32, #tpu.memory_space<vmem>>, vector<1x2xf32>
    %c21 = arith.constant 21 : index
    %c0_11 = arith.constant 0 : index
    %10 = vector.load %arg2[%c21, %c0_11] : memref<34x256xf32, #tpu.memory_space<vmem>>, vector<4x2xf32>
    %c25 = arith.constant 25 : index
    %c0_12 = arith.constant 0 : index
    %11 = vector.load %arg2[%c25, %c0_12] : memref<34x256xf32, #tpu.memory_space<vmem>>, vector<4x1xf32>
    %c29 = arith.constant 29 : index
    %c0_13 = arith.constant 0 : index
    %12 = vector.load %arg2[%c29, %c0_13] : memref<34x256xf32, #tpu.memory_space<vmem>>, vector<1x256xf32>
    %cst = arith.constant dense<0.000000e+00> : vector<2x256xf32>
    %13 = tpu.matmul %2, %1, %cst {dimension_numbers = #tpu.dot_dimension_numbers<[1], [0], [0], [1], [0, 0, 1, 1], [], []>} : vector<2x4xf32>, vector<4x256xf32>, vector<2x256xf32> -> vector<2x256xf32>
    %14 = vector.broadcast %3 : vector<2x1xf32> to vector<2x256xf32>
    %15 = arith.addf %13, %14 : vector<2x256xf32>
    %cst_14 = arith.constant 0.000000e+00 : f32
    %16 = vector.broadcast %cst_14 : f32 to vector<2x256xf32>
    %17 = arith.maximumf %15, %16 : vector<2x256xf32>
    %c255_i32 = arith.constant 255 : i32
    %18 = tpu.dynamic_rotate %17 by %c255_i32 dim 1 : vector<2x256xf32>, i32 -> vector<2x256xf32>
    %c254_i32 = arith.constant 254 : i32
    %19 = tpu.dynamic_rotate %17 by %c254_i32 dim 1 : vector<2x256xf32>, i32 -> vector<2x256xf32>
    %c240_i32 = arith.constant 240 : i32
    %20 = tpu.dynamic_rotate %17 by %c240_i32 dim 1 : vector<2x256xf32>, i32 -> vector<2x256xf32>
    %c239_i32 = arith.constant 239 : i32
    %21 = tpu.dynamic_rotate %17 by %c239_i32 dim 1 : vector<2x256xf32>, i32 -> vector<2x256xf32>
    %c238_i32 = arith.constant 238 : i32
    %22 = tpu.dynamic_rotate %17 by %c238_i32 dim 1 : vector<2x256xf32>, i32 -> vector<2x256xf32>
    %c224_i32 = arith.constant 224 : i32
    %23 = tpu.dynamic_rotate %17 by %c224_i32 dim 1 : vector<2x256xf32>, i32 -> vector<2x256xf32>
    %c223_i32 = arith.constant 223 : i32
    %24 = tpu.dynamic_rotate %17 by %c223_i32 dim 1 : vector<2x256xf32>, i32 -> vector<2x256xf32>
    %c222_i32 = arith.constant 222 : i32
    %25 = tpu.dynamic_rotate %17 by %c222_i32 dim 1 : vector<2x256xf32>, i32 -> vector<2x256xf32>
    %26 = tpu.concatenate %17, %18, %19, %20, %21, %22, %23, %24, %25 in 0 : vector<2x256xf32>, vector<2x256xf32>, vector<2x256xf32>, vector<2x256xf32>, vector<2x256xf32>, vector<2x256xf32>, vector<2x256xf32>, vector<2x256xf32>, vector<2x256xf32> -> vector<18x256xf32>
    %cst_15 = arith.constant dense<0.000000e+00> : vector<2x256xf32>
    %27 = tpu.matmul %4, %26, %cst_15 {dimension_numbers = #tpu.dot_dimension_numbers<[1], [0], [0], [1], [0, 0, 1, 1], [], []>} : vector<2x18xf32>, vector<18x256xf32>, vector<2x256xf32> -> vector<2x256xf32>
    %28 = vector.broadcast %5 : vector<2x1xf32> to vector<2x256xf32>
    %29 = arith.addf %27, %28 : vector<2x256xf32>
    %cst_16 = arith.constant 0.000000e+00 : f32
    %30 = vector.broadcast %cst_16 : f32 to vector<2x256xf32>
    %31 = arith.maximumf %29, %30 : vector<2x256xf32>
    %cst_17 = arith.constant dense<0.000000e+00> : vector<4x256xf32>
    %32 = tpu.matmul %6, %31, %cst_17 {dimension_numbers = #tpu.dot_dimension_numbers<[1], [0], [0], [1], [0, 0, 1, 1], [], []>} : vector<4x2xf32>, vector<2x256xf32>, vector<4x256xf32> -> vector<4x256xf32>
    %33 = vector.broadcast %7 : vector<4x1xf32> to vector<4x256xf32>
    %34 = arith.addf %32, %33 : vector<4x256xf32>
    %35 = vector.broadcast %12 : vector<1x256xf32> to vector<2x256xf32>
    %36 = arith.mulf %31, %35 : vector<2x256xf32>
    %cst_18 = arith.constant dense<0.000000e+00> : vector<2xf32>
    %37 = vector.multi_reduction <add>, %36, %cst_18 [1] : vector<2x256xf32> to vector<2xf32>
    %38 = vector.shape_cast %37 : vector<2xf32> to vector<2x1xf32>
    %cst_19 = arith.constant dense<0.000000e+00> : vector<4x1xf32>
    %39 = tpu.matmul %6, %38, %cst_19 {dimension_numbers = #tpu.dot_dimension_numbers<[1], [0], [0], [1], [0, 0, 1, 1], [], []>} : vector<4x2xf32>, vector<2x1xf32>, vector<4x1xf32> -> vector<4x1xf32>
    %40 = arith.addf %39, %7 : vector<4x1xf32>
    %cst_20 = arith.constant dense<0xFF800000> : vector<1xf32>
    %41 = vector.multi_reduction <maximumf>, %40, %cst_20 [0] : vector<4x1xf32> to vector<1xf32>
    %42 = vector.shape_cast %41 : vector<1xf32> to vector<1x1xf32>
    %43 = vector.broadcast %42 : vector<1x1xf32> to vector<4x1xf32>
    %44 = arith.subf %40, %43 : vector<4x1xf32>
    %45 = math.exp %44 : vector<4x1xf32>
    %cst_21 = arith.constant dense<0.000000e+00> : vector<1xf32>
    %46 = vector.multi_reduction <add>, %45, %cst_21 [0] : vector<4x1xf32> to vector<1xf32>
    %47 = vector.shape_cast %46 : vector<1xf32> to vector<1x1xf32>
    %48 = tpu.reciprocal %47 {approx = true} : vector<1x1xf32> -> vector<1x1xf32>
    %49 = vector.broadcast %48 : vector<1x1xf32> to vector<4x1xf32>
    %50 = arith.mulf %45, %49 : vector<4x1xf32>
    %51 = vector.broadcast %50 : vector<4x1xf32> to vector<4x2xf32>
    %52 = arith.mulf %8, %51 : vector<4x2xf32>
    %cst_22 = arith.constant dense<0.000000e+00> : vector<2xf32>
    %53 = vector.multi_reduction <add>, %52, %cst_22 [0] : vector<4x2xf32> to vector<2xf32>
    %54 = vector.shape_cast %53 : vector<2xf32> to vector<1x2xf32>
    %55 = arith.addf %54, %9 : vector<1x2xf32>
    %cst_23 = arith.constant 0.000000e+00 : f32
    %56 = vector.broadcast %cst_23 : f32 to vector<1x2xf32>
    %57 = arith.maximumf %55, %56 : vector<1x2xf32>
    %58 = vector.broadcast %57 : vector<1x2xf32> to vector<4x2xf32>
    %59 = arith.mulf %10, %58 : vector<4x2xf32>
    %cst_24 = arith.constant dense<0.000000e+00> : vector<4xf32>
    %60 = vector.multi_reduction <add>, %59, %cst_24 [1] : vector<4x2xf32> to vector<4xf32>
    %61 = vector.shape_cast %60 : vector<4xf32> to vector<4x1xf32>
    %62 = arith.addf %61, %11 : vector<4x1xf32>
    %cst_25 = arith.constant 0.000000e+00 : f32
    %63 = vector.broadcast %cst_25 : f32 to vector<4x1xf32>
    %64 = arith.subf %63, %62 : vector<4x1xf32>
    %65 = math.exp %64 : vector<4x1xf32>
    %cst_26 = arith.constant 1.000000e+00 : f32
    %66 = vector.broadcast %cst_26 : f32 to vector<4x1xf32>
    %67 = arith.addf %66, %65 : vector<4x1xf32>
    %68 = tpu.reciprocal %67 {approx = true} : vector<4x1xf32> -> vector<4x1xf32>
    %cst_27 = arith.constant 1.000000e+00 : f32
    %69 = vector.broadcast %cst_27 : f32 to vector<4x1xf32>
    %70 = arith.mulf %68, %69 : vector<4x1xf32>
    %71 = vector.broadcast %70 : vector<4x1xf32> to vector<4x256xf32>
    %72 = arith.mulf %34, %71 : vector<4x256xf32>
    %c30 = arith.constant 30 : index
    %c0_28 = arith.constant 0 : index
    %73 = vector.load %arg2[%c30, %c0_28] : memref<34x256xf32, #tpu.memory_space<vmem>>, vector<1x256xf32>
    %74 = vector.broadcast %73 : vector<1x256xf32> to vector<4x256xf32>
    %75 = arith.addf %72, %74 : vector<4x256xf32>
    %cst_29 = arith.constant dense<0xFF800000> : vector<4xf32>
    %76 = vector.multi_reduction <maximumf>, %75, %cst_29 [1] : vector<4x256xf32> to vector<4xf32>
    %77 = vector.shape_cast %76 : vector<4xf32> to vector<4x1xf32>
    %c31 = arith.constant 31 : index
    %c0_30 = arith.constant 0 : index
    %78 = vector.load %arg2[%c31, %c0_30] : memref<34x256xf32, #tpu.memory_space<vmem>>, vector<1x256xf32>
    %79 = vector.broadcast %78 : vector<1x256xf32> to vector<4x256xf32>
    %80 = arith.addf %72, %79 : vector<4x256xf32>
    %cst_31 = arith.constant dense<0xFF800000> : vector<4xf32>
    %81 = vector.multi_reduction <maximumf>, %80, %cst_31 [1] : vector<4x256xf32> to vector<4xf32>
    %82 = vector.shape_cast %81 : vector<4xf32> to vector<4x1xf32>
    %c32 = arith.constant 32 : index
    %c0_32 = arith.constant 0 : index
    %83 = vector.load %arg2[%c32, %c0_32] : memref<34x256xf32, #tpu.memory_space<vmem>>, vector<1x256xf32>
    %84 = vector.broadcast %83 : vector<1x256xf32> to vector<4x256xf32>
    %85 = arith.addf %72, %84 : vector<4x256xf32>
    %cst_33 = arith.constant dense<0xFF800000> : vector<4xf32>
    %86 = vector.multi_reduction <maximumf>, %85, %cst_33 [1] : vector<4x256xf32> to vector<4xf32>
    %87 = vector.shape_cast %86 : vector<4xf32> to vector<4x1xf32>
    %c33 = arith.constant 33 : index
    %c0_34 = arith.constant 0 : index
    %88 = vector.load %arg2[%c33, %c0_34] : memref<34x256xf32, #tpu.memory_space<vmem>>, vector<1x256xf32>
    %89 = vector.broadcast %88 : vector<1x256xf32> to vector<4x256xf32>
    %90 = arith.addf %72, %89 : vector<4x256xf32>
    %cst_35 = arith.constant dense<0xFF800000> : vector<4xf32>
    %91 = vector.multi_reduction <maximumf>, %90, %cst_35 [1] : vector<4x256xf32> to vector<4xf32>
    %92 = vector.shape_cast %91 : vector<4xf32> to vector<4x1xf32>
    %93 = tpu.concatenate %77, %82, %87, %92 in 1 : vector<4x1xf32>, vector<4x1xf32>, vector<4x1xf32>, vector<4x1xf32> -> vector<4x4xf32>
    %c0_36 = arith.constant 0 : index
    %c0_37 = arith.constant 0 : index
    %c0_38 = arith.constant 0 : index
    %94 = vector.load %arg3[%c0_36, %c0_37, %c0_38] : memref<1x4x4xf32, #tpu.memory_space<vmem>>, vector<1x4x4xf32>
    %95 = vector.shape_cast %94 : vector<1x4x4xf32> to vector<4x4xf32>
    %96 = vector.shape_cast %93 : vector<4x4xf32> to vector<1x4x4xf32>
    tpu.vector_store %arg3[%c0_36, %c0_37, %c0_38], %96 {strides = array<i32>} : memref<1x4x4xf32, #tpu.memory_space<vmem>>, vector<1x4x4xf32>,
    return
  }
  func.func @transform_0(%arg0: i32) -> (i32, i32, i32) {
    %c0_i32 = arith.constant 0 : i32
    %c0_i32_0 = arith.constant 0 : i32
    %c0_i32_1 = arith.constant 0 : i32
    return %arg0, %c0_i32, %c0_i32_0 : i32, i32, i32
  }
  func.func @transform_1(%arg0: i32) -> (i32, i32) {
    %c0_i32 = arith.constant 0 : i32
    %c0_i32_0 = arith.constant 0 : i32
    %c0_i32_1 = arith.constant 0 : i32
    return %c0_i32, %c0_i32_0 : i32, i32
  }
  func.func @transform_2(%arg0: i32) -> (i32, i32, i32) {
    %c0_i32 = arith.constant 0 : i32
    %c0_i32_0 = arith.constant 0 : i32
    %c0_i32_1 = arith.constant 0 : i32
    return %arg0, %c0_i32, %c0_i32_0 : i32, i32, i32
  }
}

</mosaic_0001>

<llo_original>
// kernel: tpu_custom_call.1
$region0: #{tpu_custom_call.1}
  #allocation0 [shape = 'u32[]', space=smem, size = 0x4, offset = 0x4, fixed_abs, tag = 'smem constant byte address 0x4 - core index']
  #allocation1 [shape = 'u32[144,128]{1,0:T(1,128)}', space=vmem, size = 0x12000, scoped, tag = 'internal scratch']
  %s0 = inlined_call_operand.hbm [shape: f32[2,4,256], index: 0, kind: input, shape index: {}]
  %s1 = inlined_call_operand.hbm [shape: f32[34,256], index: 1, kind: input, shape index: {}]
  %s2 = inlined_call_operand.hbm [shape: f32[2,4,4], index: 2, kind: output, shape index: {}]
  %s3 = sld [smem:[#allocation0]]
  $region49: #{tpu_custom_call.1} parent=0
    _
  %s5 = ssub.s32 1, %s3
  %s6 = scalar_select 0, %s5, %s3
  $region1: #{tpu_custom_call.1} parent=0
    #allocation2 [shape = 'u8[8192]{0}', space=vmem, size = 0x2000, scoped, tag = 'input window, operand 0']
    #allocation3 [shape = 's32[2]{0}', space=sflag, size = 0x8, scoped, tag = 'scoped memory for tpu_custom_call.1']
    #allocation4 [shape = 's32[2]{0}', space=sflag, size = 0x8, scoped, tag = 'scoped memory for tpu_custom_call.1']
    #allocation5 [shape = 'u8[40960]{0}', space=vmem, size = 0xa000, scoped, tag = 'input window, operand 1, single buffered']
    #allocation6 [shape = 's32[1]{0}', space=sflag, size = 0x4, scoped, tag = 'scoped memory for tpu_custom_call.1']
    #allocation7 [shape = 'u8[4096]{0}', space=vmem, size = 0x1000, scoped, tag = 'output window, operand 0']
    %7 = vsyncpa [#allocation3], 0
    %s8 = scalar_lea.sflag [#allocation3], 1
    %9 = vsyncpa %s8, 0
    %10 = vsyncpa [#allocation6], 0
    %11 = vsyncpa [#allocation4], 0
    %s12 = scalar_lea.sflag [#allocation4], 1
    %13 = vsyncpa %s12, 0
    loop: start=0, step=1, limit=4
    $region2: #{tpu_custom_call.1} parent=1 // loop_pre_header
      _
    $region3: #{tpu_custom_call.1} parent=1 // loop_header
      %s15 = sphi 0, %s19
      %p16 = scmp.ge.s32.totalorder %s15, 4
      %s25 = sphi 0, %s27
      %s28 = sphi 0, %s25
      %s29 = sphi 0, %s28
      %s45 = sphi 0, %s29
      %s49 = sphi 0, %s49
      %s51 = sphi 0, %s49
      %s52 = sphi 0, %s51
      %s66 = sphi 0, %s52
      %s72 = sphi 0, %s74
      %s75 = sphi 0, %s72
      %s76 = sphi 0, %s75
      %s92 = sphi 0, %s76
    $region4: #{tpu_custom_call.1} parent=1 // loop_header_branch
      %18 = sbr.rel (%p16) target = $region8
    $region5: #{tpu_custom_call.1} parent=1 // loop_body
      %s20 = ssub.s32 %s15, 1
      %s21 = ssub.s32 %s15, 2
      %s22 = sadd.s32 %s15, 1
      %s23 = ssub.s32 %s15, %s22
      %p24 = scmp.eq.s32.totalorder %s23, 0
      %s26 = sadd.s32 %s25, 1
      %s27 = scalar_select %p24, %s25, %s26
      %p30 = pneg %p24
      %p31 = scmp.eq.s32.totalorder %s15, 1
      %p32 = por %p30, %p31
      %p33 = scmp.ne.s32.totalorder %s25, %s28
      %p34 = scmp.eq.s32.totalorder %s15, 0
      %p35 = por %p33, %p34
      %p36 = scmp.ne.s32.totalorder %s25, %s28
      %p37 = scmp.eq.s32.totalorder %s20, 1
      %p38 = por %p36, %p37
      %p39 = scmp.ne.s32.totalorder %s28, %s29
      %p40 = scmp.eq.s32.totalorder %s20, 0
      %p41 = por %p39, %p40
      %p42 = scmp.ne.s32.totalorder %s28, %s29
      %p43 = scmp.eq.s32.totalorder %s21, 1
      %p44 = por %p42, %p43
      %p46 = scmp.ne.s32.totalorder %s29, %s45
      %p47 = scmp.eq.s32.totalorder %s21, 0
      %p48 = por %p46, %p47
      %s50 = sadd.s32 %s49, 1
      %p53 = scmp.eq.s32.totalorder %s15, 1
      %p54 = scmp.ne.s32.totalorder %s49, %s51
      %p55 = scmp.eq.s32.totalorder %s15, 0
      %p56 = por %p54, %p55
      %p57 = scmp.ne.s32.totalorder %s49, %s51
      %p58 = scmp.eq.s32.totalorder %s20, 1
      %p59 = por %p57, %p58
      %p60 = scmp.ne.s32.totalorder %s51, %s52
      %p61 = scmp.eq.s32.totalorder %s20, 0
      %p62 = por %p60, %p61
      %p63 = scmp.ne.s32.totalorder %s51, %s52
      %p64 = scmp.eq.s32.totalorder %s21, 1
      %p65 = por %p63, %p64
      %p67 = scmp.ne.s32.totalorder %s52, %s66
      %p68 = scmp.eq.s32.totalorder %s21, 0
      %p69 = por %p67, %p68
      %s70 = ssub.s32 %s15, %s22
      %p71 = scmp.eq.s32.totalorder %s70, 0
      %s73 = sadd.s32 %s72, 1
      %s74 = scalar_select %p71, %s72, %s73
      %p77 = pneg %p71
      %p78 = scmp.eq.s32.totalorder %s15, 1
      %p79 = por %p77, %p78
      %p80 = scmp.ne.s32.totalorder %s72, %s75
      %p81 = scmp.eq.s32.totalorder %s15, 0
      %p82 = por %p80, %p81
      %p83 = scmp.ne.s32.totalorder %s72, %s75
      %p84 = scmp.eq.s32.totalorder %s20, 1
      %p85 = por %p83, %p84
      %p86 = scmp.ne.s32.totalorder %s75, %s76
      %p87 = scmp.eq.s32.totalorder %s20, 0
      %p88 = por %p86, %p87
      %p89 = scmp.ne.s32.totalorder %s75, %s76
      %p90 = scmp.eq.s32.totalorder %s21, 1
      %p91 = por %p89, %p90
      %p93 = scmp.ne.s32.totalorder %s76, %s92
      %p94 = scmp.eq.s32.totalorder %s21, 0
      %p95 = por %p93, %p94
      %p96 = scmp.le.s32.totalorder 1, %s15
      %p97 = scmp.lt.s32.totalorder %s15, 3
      %p98 = pnand %p96, %p97
      %p99 = pneg %p98
      // Predicated region
      $region9: #{tpu_custom_call.1} parent=5 // pred_check
        _
      $region10: #{tpu_custom_call.1} parent=5 // pred_check_branch
        %101 = sbr.rel (%p98) target = $region12
      $region11: #{tpu_custom_call.1} parent=5 // pred_region
        %s102 = ssub.s32 %s15, 1
        // Predicated region
        $region13: #{tpu_custom_call.1} parent=11 // pred_check
          %p103 = pneg %p62
        $region14: #{tpu_custom_call.1} parent=11 // pred_check_branch
          %105 = sbr.rel (%p103) target = $region16
        $region15: #{tpu_custom_call.1} parent=11 // pred_region
          %s107 = ssub.s32 1280, 1280
          %108 = vsyncadd [#allocation6], %s107
          %s109 = sshll.u32 [#allocation5], 4
          %s110 = int_to_ptr.vmem [resolvable:$true] %s109
          %115 = dma.hbm_to_vmem [thread:$0]  %s1, 1280, %s110, [#allocation6], 256, 256, 16
        $region16: #{tpu_custom_call.1} parent=11 // pred_fallthru
          _
      $region12: #{tpu_custom_call.1} parent=5 // pred_fallthru
        _
      %p116 = scmp.lt.s32.totalorder %s15, 2
      // Predicated region
      $region17: #{tpu_custom_call.1} parent=5 // pred_check
        %p117 = pneg %p116
      $region18: #{tpu_custom_call.1} parent=5 // pred_check_branch
        %119 = sbr.rel (%p117) target = $region20
      $region19: #{tpu_custom_call.1} parent=5 // pred_region
        // Predicated region
        $region21: #{tpu_custom_call.1} parent=19 // pred_check
          %p120 = pneg %p35
        $region22: #{tpu_custom_call.1} parent=19 // pred_check_branch
          %122 = sbr.rel (%p120) target = $region24
        $region23: #{tpu_custom_call.1} parent=19 // pred_region
          %s123 = sand.u32 %s25, 1
          %s124 = scalar_lea.sflag [#allocation3], %s123
          %s125 = sand.u32 %s25, 1
          %s126 = smul.addr %s125, 8
          %s127 = scalar_lea.vmem [#allocation2], %s126
          %s129 = ssub.s32 128, 128
          %130 = vsyncadd %s124, %s129
          %s131 = smul.addr %s15, 2
          %s132 = smul.addr %s131, 64
          %s133 = scalar_lea.hbm %s0, %s132
          %s135 = sshll.u32 %s127, 4
          %s136 = int_to_ptr.vmem [resolvable:$true] %s135
          %138 = dma.hbm_to_vmem [thread:$0]  %s133, 128, %s136, %s124
        $region24: #{tpu_custom_call.1} parent=19 // pred_fallthru
          _
      $region20: #{tpu_custom_call.1} parent=5 // pred_fallthru
        _
      %p139 = scmp.le.s32.totalorder 1, %s15
      %p140 = scmp.lt.s32.totalorder %s15, 3
      %p141 = pnand %p139, %p140
      %p142 = pneg %p141
      // Predicated region
      $region25: #{tpu_custom_call.1} parent=5 // pred_check
        _
      $region26: #{tpu_custom_call.1} parent=5 // pred_check_branch
        %144 = sbr.rel (%p141) target = $region28
      $region27: #{tpu_custom_call.1} parent=5 // pred_region
        %s145 = ssub.s32 %s15, 1
        %s146 = sand.u32 %s28, 1
        %s147 = scalar_lea.sflag [#allocation3], %s146
        %s148 = sand.u32 %s28, 1
        %s149 = smul.addr %s148, 8
        %s150 = scalar_lea.vmem [#allocation2], %s149
        // Predicated region
        $region29: #{tpu_custom_call.1} parent=27 // pred_check
          %p151 = pneg %p41
        $region30: #{tpu_custom_call.1} parent=27 // pred_check_branch
          %153 = sbr.rel (%p151) target = $region32
        $region31: #{tpu_custom_call.1} parent=27 // pred_region
          %154 = dma.done %s147, 128
        $region32: #{tpu_custom_call.1} parent=27 // pred_fallthru
          _
        // Predicated region
        $region33: #{tpu_custom_call.1} parent=27 // pred_check
          %p155 = pneg %p62
        $region34: #{tpu_custom_call.1} parent=27 // pred_check_branch
          %157 = sbr.rel (%p155) target = $region36
        $region35: #{tpu_custom_call.1} parent=27 // pred_region
          %158 = dma.done [#allocation6], 1280
        $region36: #{tpu_custom_call.1} parent=27 // pred_fallthru
          _
        %s159 = sand.u32 %s28, 1
        %s160 = scalar_lea.sflag [#allocation3], %s159
        %s161 = sand.u32 %s28, 1
        %s162 = smul.addr %s161, 8
        %s163 = scalar_lea.vmem [#allocation2], %s162
        %p164 = pneg %p41
        %p165 = pneg %p38
        %p166 = pneg %p62
        %p167 = pneg %p59
        %p168 = pneg %p88
        %p169 = pneg %p85
        %s170 = sand.u32 %s75, 1
        %s171 = scalar_lea.sflag [#allocation4], %s170
        %s172 = sand.u32 %s75, 1
        %s173 = smul.addr %s172, 4
        %s174 = scalar_lea.vmem [#allocation7], %s173
        %v175 = vld [vmem:[%s150] sm:$0xff]
        %v176 = vld [vmem:[#allocation5] sm:$0x3]
        %v177 = vld [vmem:[#allocation5] sm:$0xc]
        %v178 = vld [vmem:[#allocation5] sm:$0x30]
        %v179 = vld [vmem:[#allocation5] sm:$0xc0]
        %v180 = vld [vmem:[#allocation5 + $0x10] sm:$0xf]
        %v181 = vld [vmem:[#allocation5 + $0x10] sm:$0xf0]
        %v182 = vld [vmem:[#allocation5 + $0x20] sm:$0xf]
        %v183 = vld [vmem:[#allocation5 + $0x24] ss:$0 sm:$0xff]
        %v184 = vld [vmem:[#allocation5 + $0x20] sm:$0xe0]
        %v185 = vld [vmem:[#allocation5 + $0x30] sm:$0x1]
        %v186 = vld [vmem:[#allocation5 + $0x30] sm:$0x1e]
        %s187 = scalar_lea.vmem [#allocation5], 53
        %v188 = vld [vmem:[%s187] ss:$8 sm:$0x3]
        %190 = vset.pattern.permute.xlu0 0
        %191 = vperm.xlu0 %190, %v177
        %v192 = vpop.permute.xlu0 %191
        %v194 = vcombine.high %v175, %v175
        %v195 = vrot.slane %v192, 2
        %vm197 = vcmask 31744
        %v199 = vsel %vm197, %v176, 0
        %vm201 = vcmask 1043456
        %v202 = vsel %vm201, %v175, 0
        %v204 = vsel %vm201, %v194, 0
        %206 = vmatprep.subr.mxu0 %v204
        %207 = vmatpush1.msra.mxu0 %v202
        %208 = vmatprep.subr.mxu0 0.0
        %209 = vmatpush1.msra.mxu0 0.0
        %210 = vmatprep.subr.mxu0 0.0
        %211 = vmatpush1.msra.mxu0 0.0
        %212 = vmatprep.subr.mxu0 0.0
        %213 = vmatpush1.msra.mxu0 0.0
        %214 = vmatprep.subr.mxu0 0.0
        %215 = vmatpush1.msra.mxu0 0.0
        %216 = vmatprep.subr.mxu0 0.0
        %217 = vmatpush1.msra.mxu0 0.0
        %218 = vmatprep.subr.mxu0 0.0
        %219 = vmatpush1.msra.mxu0 0.0
        %220 = vmatprep.subr.mxu0 0.0
        %221 = vmatpush1.msra.mxu0 0.0
        %222 = vmatprep.subr.mxu0 0.0
        %223 = vmatpush1.msra.mxu0 0.0
        %224 = vmatprep.subr.mxu0 0.0
        %225 = vmatpush1.msra.mxu0 0.0
        %226 = vmatprep.subr.mxu0 0.0
        %227 = vmatpush1.msra.mxu0 0.0
        %228 = vmatprep.subr.mxu0 0.0
        %229 = vmatpush1.msra.mxu0 0.0
        %230 = vmatprep.subr.mxu0 0.0
        %231 = vmatpush1.msra.mxu0 0.0
        %232 = vmatprep.subr.mxu0 0.0
        %233 = vmatpush1.msra.mxu0 0.0
        %234 = vmatprep.subr.mxu0 0.0
        %235 = vmatpush1.msra.mxu0 0.0
        %236 = vmatprep.subr.mxu0 0.0
        %237 = vmatpush1.msra.mxu0 0.0
        %238 = vmatprep.subr.mxu0 0.0
        %239 = vmatpush1.msra.mxu0 0.0
        %240 = vmatprep.subr.mxu0 0.0
        %241 = vmatpush1.msra.mxu0 0.0
        %242 = vmatprep.subr.mxu0 0.0
        %243 = vmatpush1.msra.mxu0 0.0
        %244 = vmatprep.subr.mxu0 0.0
        %245 = vmatpush1.msra.mxu0 0.0
        %246 = vmatprep.subr.mxu0 0.0
        %247 = vmatpush1.msra.mxu0 0.0
        %248 = vmatprep.subr.mxu0 0.0
        %249 = vmatpush1.msra.mxu0 0.0
        %250 = vmatprep.subr.mxu0 0.0
        %251 = vmatpush1.msra.mxu0 0.0
        %252 = vmatprep.subr.mxu0 0.0
        %253 = vmatpush1.msra.mxu0 0.0
        %254 = vmatprep.subr.mxu0 0.0
        %255 = vmatpush1.msra.mxu0 0.0
        %256 = vmatprep.subr.mxu0 0.0
        %257 = vmatpush1.msra.mxu0 0.0
        %258 = vmatprep.subr.mxu0 0.0
        %259 = vmatpush1.msra.mxu0 0.0
        %260 = vmatprep.subr.mxu0 0.0
        %261 = vmatpush1.msra.mxu0 0.0
        %262 = vmatprep.subr.mxu0 0.0
        %263 = vmatpush1.msra.mxu0 0.0
        %264 = vmatprep.subr.mxu0 0.0
        %265 = vmatpush1.msra.mxu0 0.0
        %266 = vmatprep.subr.mxu0 0.0
        %267 = vmatpush1.msra.mxu0 0.0
        %268 = vmatprep.subr.mxu0 0.0
        %269 = vmatpush1.msra.mxu0 0.0
        %270 = vmatprep.mubr.f32.mxu0 0.0
        %271 = vmatmul.mubr.f32.gmra.mrb[0].mxu0 %v199
        %v272 = vpop.f32.mrb[0].mxu0
        %v273 = vadd.f32 %v195, %v272
        %v274 = vpop.f32.mrb[0].mxu0
        %v275 = vadd.f32 %v195, %v274
        %276 = vdwg.mxu0
        %v277 = vmax.f32 %v273, 0.0
        %v278 = vmax.f32 %v275, 0.0
        %279 = vrot.lane.b32.xlu0 %v277, 127
        %v280 = vpop.permute.xlu0 %279
        %281 = vrot.lane.b32.xlu0 %v278, 127
        %v282 = vpop.permute.xlu0 %281
        %v283 = vlaneseq
        %v284 = vand.u32 %v283, 127
        %vm285 = vcmp.lt.s32.totalorder %v284, 127
        %v286 = vsel %vm285, %v280, %v282
        %v287 = vsel %vm285, %v282, %v280
        %288 = vrot.lane.b32.xlu0 %v277, 126
        %v289 = vpop.permute.xlu0 %288
        %290 = vrot.lane.b32.xlu0 %v278, 126
        %v291 = vpop.permute.xlu0 %290
        %vm292 = vcmp.lt.s32.totalorder %v284, 126
        %v293 = vsel %vm292, %v289, %v291
        %v294 = vsel %vm292, %v291, %v289
        %295 = vrot.lane.b32.xlu0 %v277, 112
        %v296 = vpop.permute.xlu0 %295
        %297 = vrot.lane.b32.xlu0 %v278, 112
        %v298 = vpop.permute.xlu0 %297
        %vm299 = vcmp.lt.s32.totalorder %v284, 112
        %v300 = vsel %vm299, %v296, %v298
        %v301 = vsel %vm299, %v298, %v296
        %302 = vrot.lane.b32.xlu0 %v277, 111
        %v303 = vpop.permute.xlu0 %302
        %304 = vrot.lane.b32.xlu0 %v278, 111
        %v305 = vpop.permute.xlu0 %304
        %vm306 = vcmp.lt.s32.totalorder %v284, 111
        %v307 = vsel %vm306, %v303, %v305
        %v308 = vsel %vm306, %v305, %v303
        %309 = vrot.lane.b32.xlu0 %v277, 110
        %v310 = vpop.permute.xlu0 %309
        %311 = vrot.lane.b32.xlu0 %v278, 110
        %v312 = vpop.permute.xlu0 %311
        %vm313 = vcmp.lt.s32.totalorder %v284, 110
        %v314 = vsel %vm313, %v310, %v312
        %v315 = vsel %vm313, %v312, %v310
        %316 = vrot.lane.b32.xlu0 %v277, 96
        %v317 = vpop.permute.xlu0 %316
        %318 = vrot.lane.b32.xlu0 %v278, 96
        %v319 = vpop.permute.xlu0 %318
        %vm320 = vcmp.lt.s32.totalorder %v284, 96
        %v321 = vsel %vm320, %v317, %v319
        %v322 = vsel %vm320, %v319, %v317
        %323 = vrot.lane.b32.xlu0 %v277, 95
        %v324 = vpop.permute.xlu0 %323
        %325 = vrot.lane.b32.xlu0 %v278, 95
        %v326 = vpop.permute.xlu0 %325
        %vm327 = vcmp.lt.s32.totalorder %v284, 95
        %v328 = vsel %vm327, %v324, %v326
        %v329 = vsel %vm327, %v326, %v324
        %330 = vrot.lane.b32.xlu0 %v277, 94
        %v331 = vpop.permute.xlu0 %330
        %332 = vrot.lane.b32.xlu0 %v278, 94
        %v333 = vpop.permute.xlu0 %332
        %vm334 = vcmp.lt.s32.totalorder %v284, 94
        %v335 = vsel %vm334, %v331, %v333
        %v336 = vsel %vm334, %v333, %v331
        %v339 = vrot.slane %v286, 6
        %v340 = vrot.slane %v287, 6
        %v345 = vrot.slane %v293, 4
        %v346 = vrot.slane %v294, 4
        %v351 = vrot.slane %v300, 2
        %v352 = vrot.slane %v301, 2
        %v357 = vrot.slane %v314, 6
        %v358 = vrot.slane %v315, 6
        %v363 = vrot.slane %v321, 4
        %v364 = vrot.slane %v322, 4
        %v369 = vrot.slane %v328, 2
        %v370 = vrot.slane %v329, 2
        %vm373 = vcmask 1041408
        %v374 = vsel %vm373, %v277, %v339
        %v375 = vsel %vm373, %v278, %v340
        %v376 = vsel %vm201, %v374, %v345
        %v377 = vsel %vm201, %v375, %v346
        %vm378 = vcmask 1045504
        %v379 = vsel %vm378, %v376, %v351
        %v380 = vsel %vm378, %v377, %v352
        %v381 = vsel %vm373, %v307, %v357
        %v382 = vsel %vm373, %v308, %v358
        %v383 = vsel %vm201, %v381, %v363
        %v384 = vsel %vm201, %v382, %v364
        %v385 = vsel %vm378, %v383, %v369
        %v386 = vsel %vm378, %v384, %v370
        %388 = vset.pattern.permute.xlu0 0
        %389 = vperm.xlu0 %388, %v179
        %v390 = vpop.permute.xlu0 %389
        %v392 = vrot.slane %v178, 4
        %v393 = vrot.slane %v390, 6
        %vm395 = vcmask 146432
        %v396 = vsel %vm395, %v392, 0
        %v399 = vsel %vm373, %v335, 0
        %v402 = vsel %vm373, %v336, 0
        %404 = vmatprep.subr.mxu0 %v380
        %405 = vmatpush1.msra.mxu0 %v379
        %406 = vmatprep.subr.mxu0 %v386
        %407 = vmatpush1.msra.mxu0 %v385
        %408 = vmatprep.subr.mxu0 %v402
        %409 = vmatpush1.msra.mxu0 %v399
        %410 = vmatprep.subr.mxu0 0.0
        %411 = vmatpush1.msra.mxu0 0.0
        %412 = vmatprep.subr.mxu0 0.0
        %413 = vmatpush1.msra.mxu0 0.0
        %414 = vmatprep.subr.mxu0 0.0
        %415 = vmatpush1.msra.mxu0 0.0
        %416 = vmatprep.subr.mxu0 0.0
        %417 = vmatpush1.msra.mxu0 0.0
        %418 = vmatprep.subr.mxu0 0.0
        %419 = vmatpush1.msra.mxu0 0.0
        %420 = vmatprep.subr.mxu0 0.0
        %421 = vmatpush1.msra.mxu0 0.0
        %422 = vmatprep.subr.mxu0 0.0
        %423 = vmatpush1.msra.mxu0 0.0
        %424 = vmatprep.subr.mxu0 0.0
        %425 = vmatpush1.msra.mxu0 0.0
        %426 = vmatprep.subr.mxu0 0.0
        %427 = vmatpush1.msra.mxu0 0.0
        %428 = vmatprep.subr.mxu0 0.0
        %429 = vmatpush1.msra.mxu0 0.0
        %430 = vmatprep.subr.mxu0 0.0
        %431 = vmatpush1.msra.mxu0 0.0
        %432 = vmatprep.subr.mxu0 0.0
        %433 = vmatpush1.msra.mxu0 0.0
        %434 = vmatprep.subr.mxu0 0.0
        %435 = vmatpush1.msra.mxu0 0.0
        %436 = vmatprep.subr.mxu0 0.0
        %437 = vmatpush1.msra.mxu0 0.0
        %438 = vmatprep.subr.mxu0 0.0
        %439 = vmatpush1.msra.mxu0 0.0
        %440 = vmatprep.subr.mxu0 0.0
        %441 = vmatpush1.msra.mxu0 0.0
        %442 = vmatprep.subr.mxu0 0.0
        %443 = vmatpush1.msra.mxu0 0.0
        %444 = vmatprep.subr.mxu0 0.0
        %445 = vmatpush1.msra.mxu0 0.0
        %446 = vmatprep.subr.mxu0 0.0
        %447 = vmatpush1.msra.mxu0 0.0
        %448 = vmatprep.subr.mxu0 0.0
        %449 = vmatpush1.msra.mxu0 0.0
        %450 = vmatprep.subr.mxu0 0.0
        %451 = vmatpush1.msra.mxu0 0.0
        %452 = vmatprep.subr.mxu0 0.0
        %453 = vmatpush1.msra.mxu0 0.0
        %454 = vmatprep.subr.mxu0 0.0
        %455 = vmatpush1.msra.mxu0 0.0
        %456 = vmatprep.subr.mxu0 0.0
        %457 = vmatpush1.msra.mxu0 0.0
        %458 = vmatprep.subr.mxu0 0.0
        %459 = vmatpush1.msra.mxu0 0.0
        %460 = vmatprep.subr.mxu0 0.0
        %461 = vmatpush1.msra.mxu0 0.0
        %462 = vmatprep.subr.mxu0 0.0
        %463 = vmatpush1.msra.mxu0 0.0
        %464 = vmatprep.subr.mxu0 0.0
        %465 = vmatpush1.msra.mxu0 0.0
        %466 = vmatprep.subr.mxu0 0.0
        %467 = vmatpush1.msra.mxu0 0.0
        %468 = vmatprep.mubr.f32.mxu0 0.0
        %469 = vmatmul.mubr.f32.gmra.mrb[0].mxu0 %v396
        %v470 = vpop.f32.mrb[0].mxu0
        %v471 = vadd.f32 %v393, %v470
        %v472 = vpop.f32.mrb[0].mxu0
        %v473 = vadd.f32 %v393, %v472
        %474 = vdwg.mxu0
        %v475 = vmax.f32 %v471, 0.0
        %v476 = vmax.f32 %v473, 0.0
        %478 = vset.pattern.permute.xlu0 0
        %479 = vperm.xlu0 %478, %v181
        %v480 = vpop.permute.xlu0 %479
        %v481 = vrot.slane %v480, 4
        %vm483 = vcmask 15360
        %v485 = vsel %vm483, %v180, 0
        %v488 = vsel %vm373, %v475, 0
        %v491 = vsel %vm373, %v476, 0
        %493 = vmatprep.subr.mxu0 %v491
        %494 = vmatpush1.msra.mxu0 %v488
        %495 = vmatprep.subr.mxu0 0.0
        %496 = vmatpush1.msra.mxu0 0.0
        %497 = vmatprep.subr.mxu0 0.0
        %498 = vmatpush1.msra.mxu0 0.0
        %499 = vmatprep.subr.mxu0 0.0
        %500 = vmatpush1.msra.mxu0 0.0
        %501 = vmatprep.subr.mxu0 0.0
        %502 = vmatpush1.msra.mxu0 0.0
        %503 = vmatprep.subr.mxu0 0.0
        %504 = vmatpush1.msra.mxu0 0.0
        %505 = vmatprep.subr.mxu0 0.0
        %506 = vmatpush1.msra.mxu0 0.0
        %507 = vmatprep.subr.mxu0 0.0
        %508 = vmatpush1.msra.mxu0 0.0
        %509 = vmatprep.subr.mxu0 0.0
        %510 = vmatpush1.msra.mxu0 0.0
        %511 = vmatprep.subr.mxu0 0.0
        %512 = vmatpush1.msra.mxu0 0.0
        %513 = vmatprep.subr.mxu0 0.0
        %514 = vmatpush1.msra.mxu0 0.0
        %515 = vmatprep.subr.mxu0 0.0
        %516 = vmatpush1.msra.mxu0 0.0
        %517 = vmatprep.subr.mxu0 0.0
        %518 = vmatpush1.msra.mxu0 0.0
        %519 = vmatprep.subr.mxu0 0.0
        %520 = vmatpush1.msra.mxu0 0.0
        %521 = vmatprep.subr.mxu0 0.0
        %522 = vmatpush1.msra.mxu0 0.0
        %523 = vmatprep.subr.mxu0 0.0
        %524 = vmatpush1.msra.mxu0 0.0
        %525 = vmatprep.subr.mxu0 0.0
        %526 = vmatpush1.msra.mxu0 0.0
        %527 = vmatprep.subr.mxu0 0.0
        %528 = vmatpush1.msra.mxu0 0.0
        %529 = vmatprep.subr.mxu0 0.0
        %530 = vmatpush1.msra.mxu0 0.0
        %531 = vmatprep.subr.mxu0 0.0
        %532 = vmatpush1.msra.mxu0 0.0
        %533 = vmatprep.subr.mxu0 0.0
        %534 = vmatpush1.msra.mxu0 0.0
        %535 = vmatprep.subr.mxu0 0.0
        %536 = vmatpush1.msra.mxu0 0.0
        %537 = vmatprep.subr.mxu0 0.0
        %538 = vmatpush1.msra.mxu0 0.0
        %539 = vmatprep.subr.mxu0 0.0
        %540 = vmatpush1.msra.mxu0 0.0
        %541 = vmatprep.subr.mxu0 0.0
        %542 = vmatpush1.msra.mxu0 0.0
        %543 = vmatprep.subr.mxu0 0.0
        %544 = vmatpush1.msra.mxu0 0.0
        %545 = vmatprep.subr.mxu0 0.0
        %546 = vmatpush1.msra.mxu0 0.0
        %547 = vmatprep.subr.mxu0 0.0
        %548 = vmatpush1.msra.mxu0 0.0
        %549 = vmatprep.subr.mxu0 0.0
        %550 = vmatpush1.msra.mxu0 0.0
        %551 = vmatprep.subr.mxu0 0.0
        %552 = vmatpush1.msra.mxu0 0.0
        %553 = vmatprep.subr.mxu0 0.0
        %554 = vmatpush1.msra.mxu0 0.0
        %555 = vmatprep.subr.mxu0 0.0
        %556 = vmatpush1.msra.mxu0 0.0
        %557 = vmatprep.mubr.f32.mxu0 0.0
        %558 = vmatmul.mubr.f32.gmra.mrb[0].mxu0 %v485
        %v559 = vpop.f32.mrb[0].mxu0
        %v560 = vadd.f32 %v481, %v559
        %v561 = vpop.f32.mrb[0].mxu0
        %v562 = vadd.f32 %v481, %v561
        %563 = vdwg.mxu0
        %v565 = vlaneseq
        %v566 = vshrl.u32 %v565, 7
        %v567 = vsub.s32 0, %v566
        %v568 = vrot.slane %v188, %v567
        %v569 = vlaneseq
        %v570 = vshrl.u32 %v569, 7
        %v571 = vsub.s32 1, %v570
        %v572 = vrot.slane %v188, %v571
        %v575 = vmul.f32 %v475, %v568
        %v576 = vmul.f32 %v476, %v572
        %v577 = vsel %vm373, %v575, 0.0
        %v578 = vsel %vm373, %v576, 0.0
        %v579 = vadd.f32 %v577, %v578
        %580 = vadd.xlane.f32.xlu0 %v579
        %v581 = vpop.xlane.xlu0 %580
        %v582 = vrot.slane %v181, 4
        %v585 = vsel %vm373, %v581, 0
        %587 = vmatprep.subr.mxu0 0.0
        %588 = vmatpush1.msra.mxu0 %v585
        %589 = vmatprep.subr.mxu0 0.0
        %590 = vmatpush1.msra.mxu0 0.0
        %591 = vmatprep.subr.mxu0 0.0
        %592 = vmatpush1.msra.mxu0 0.0
        %593 = vmatprep.subr.mxu0 0.0
        %594 = vmatpush1.msra.mxu0 0.0
        %595 = vmatprep.subr.mxu0 0.0
        %596 = vmatpush1.msra.mxu0 0.0
        %597 = vmatprep.subr.mxu0 0.0
        %598 = vmatpush1.msra.mxu0 0.0
        %599 = vmatprep.subr.mxu0 0.0
        %600 = vmatpush1.msra.mxu0 0.0
        %601 = vmatprep.subr.mxu0 0.0
        %602 = vmatpush1.msra.mxu0 0.0
        %603 = vmatprep.subr.mxu0 0.0
        %604 = vmatpush1.msra.mxu0 0.0
        %605 = vmatprep.subr.mxu0 0.0
        %606 = vmatpush1.msra.mxu0 0.0
        %607 = vmatprep.subr.mxu0 0.0
        %608 = vmatpush1.msra.mxu0 0.0
        %609 = vmatprep.subr.mxu0 0.0
        %610 = vmatpush1.msra.mxu0 0.0
        %611 = vmatprep.subr.mxu0 0.0
        %612 = vmatpush1.msra.mxu0 0.0
        %613 = vmatprep.subr.mxu0 0.0
        %614 = vmatpush1.msra.mxu0 0.0
        %615 = vmatprep.subr.mxu0 0.0
        %616 = vmatpush1.msra.mxu0 0.0
        %617 = vmatprep.subr.mxu0 0.0
        %618 = vmatpush1.msra.mxu0 0.0
        %619 = vmatprep.subr.mxu0 0.0
        %620 = vmatpush1.msra.mxu0 0.0
        %621 = vmatprep.subr.mxu0 0.0
        %622 = vmatpush1.msra.mxu0 0.0
        %623 = vmatprep.subr.mxu0 0.0
        %624 = vmatpush1.msra.mxu0 0.0
        %625 = vmatprep.subr.mxu0 0.0
        %626 = vmatpush1.msra.mxu0 0.0
        %627 = vmatprep.subr.mxu0 0.0
        %628 = vmatpush1.msra.mxu0 0.0
        %629 = vmatprep.subr.mxu0 0.0
        %630 = vmatpush1.msra.mxu0 0.0
        %631 = vmatprep.subr.mxu0 0.0
        %632 = vmatpush1.msra.mxu0 0.0
        %633 = vmatprep.subr.mxu0 0.0
        %634 = vmatpush1.msra.mxu0 0.0
        %635 = vmatprep.subr.mxu0 0.0
        %636 = vmatpush1.msra.mxu0 0.0
        %637 = vmatprep.subr.mxu0 0.0
        %638 = vmatpush1.msra.mxu0 0.0
        %639 = vmatprep.subr.mxu0 0.0
        %640 = vmatpush1.msra.mxu0 0.0
        %641 = vmatprep.subr.mxu0 0.0
        %642 = vmatpush1.msra.mxu0 0.0
        %643 = vmatprep.subr.mxu0 0.0
        %644 = vmatpush1.msra.mxu0 0.0
        %645 = vmatprep.subr.mxu0 0.0
        %646 = vmatpush1.msra.mxu0 0.0
        %647 = vmatprep.subr.mxu0 0.0
        %648 = vmatpush1.msra.mxu0 0.0
        %649 = vmatprep.subr.mxu0 0.0
        %650 = vmatpush1.msra.mxu0 0.0
        %651 = vmatprep.mubr.f32.mxu0 0.0
        %652 = vmatmul.mubr.f32.gmra.mrb[0].mxu0 %v485
        %v653 = vpop.f32.mrb[0].mxu0
        %v654 = vadd.f32 %v582, %v653
        %v655 = vpop.f32.mrb[0].mxu0
        %656 = vdwg.mxu0
        %vm657 = vcmask 3072
        %v658 = vsel %vm657, %v654, -inf
        %v659 = vrot.slane %v658, 4
        %v660 = vmax.f32 %v658, %v659
        %v661 = vrot.slane %v660, 2
        %v662 = vmax.f32 %v660, %v661
        %v663 = vrot.slane %v662, 1
        %v664 = vmax.f32 %v662, %v663
        %v665 = vsub.f32 %v654, %v664
        %v666 = vmul.f32 %v665, 1.442695
        %v667 = vpow.pop %v666
        %v668 = vsel %vm657, %v667, 0.0
        %v669 = vrot.slane %v668, 4
        %v670 = vadd.f32 %v668, %v669
        %v671 = vrot.slane %v670, 2
        %v672 = vadd.f32 %v670, %v671
        %v673 = vrot.slane %v672, 1
        %v674 = vadd.f32 %v672, %v673
        %v675 = vrcp.pop %v674
        %v676 = vmul.f32 %v667, %v675
        %678 = vset.pattern.permute.xlu0 0
        %679 = vperm.xlu0 %678, %v676
        %v680 = vpop.permute.xlu0 %679
        %v682 = vmul.f32 %v182, %v680
        %vm683 = vcmask 11264
        %v684 = vsel %vm683, %v682, 0.0
        %v685 = vrot.slane %v684, 4
        %v686 = vadd.f32 %v684, %v685
        %v687 = vrot.slane %v686, 2
        %v688 = vadd.f32 %v686, %v687
        %v689 = vrot.slane %v688, 1
        %v690 = vadd.f32 %v688, %v689
        %v691 = vadd.f32 %v690, %v183
        %v692 = vmax.f32 %v691, 0.0
        %v693 = vmul.f32 %v184, %v692
        %v694 = vmul.f32 %v185, %v692
        %vm695 = vcmask 15365
        %v696 = vsel %vm695, %v693, 0.0
        %697 = vadd.xlane.f32.xlu0 %v696
        %v698 = vpop.xlane.xlu0 %697
        %vm699 = vcmask 8192
        %v700 = vsel %vm699, %v694, 0.0
        %701 = vadd.xlane.f32.xlu0 %v700
        %v702 = vpop.xlane.xlu0 %701
        %v704 = vrot.slane %v186, 4
        %v706 = vadd.f32 %v698, %v704
        %v707 = vadd.f32 %v702, %v704
        %v708 = vsub.f32 0.0, %v706
        %v709 = vsub.f32 0.0, %v707
        %v710 = vmul.f32 %v708, 1.442695
        %v711 = vpow.pop %v710
        %v712 = vmul.f32 %v709, 1.442695
        %v713 = vpow.pop %v712
        %v714 = vadd.f32 %v711, 1.0
        %v715 = vadd.f32 %v713, 1.0
        %v716 = vrcp.pop %v714
        %v717 = vrcp.pop %v715
        %719 = vset.pattern.permute.xlu0 0
        %720 = vperm.xlu0 %719, %v716
        %v721 = vpop.permute.xlu0 %720
        %723 = vset.pattern.permute.xlu0 0
        %724 = vperm.xlu0 %723, %v717
        %v725 = vpop.permute.xlu0 %724
        %vm726 = vcmask 1042432
        %v727 = vrot.slane %v721, 5
        %v728 = vrot.slane %v725, 5
        %v729 = vsel %vm726, %v727, %v728
        %v731 = vmul.f32 %v560, %v729
        %v732 = vmul.f32 %v562, %v729
        %s733 = scalar_lea.vmem [#allocation5], 54
        %v734 = vld [vmem:[%s733] ss:$8 sm:$0x3]
        %v736 = vlaneseq
        %v737 = vshrl.u32 %v736, 7
        %v738 = vsub.s32 0, %v737
        %v739 = vrot.slane %v734, %v738
        %v740 = vlaneseq
        %v741 = vshrl.u32 %v740, 7
        %v742 = vsub.s32 1, %v741
        %v743 = vrot.slane %v734, %v742
        %v746 = vadd.f32 %v731, %v739
        %v747 = vadd.f32 %v732, %v743
        %v748 = vsel %vm201, %v746, -inf
        %v749 = vsel %vm201, %v747, -inf
        %v750 = vmax.f32 %v748, %v749
        %751 = vmax.xlane.f32.xlu0 %v750
        %v752 = vpop.xlane.xlu0 %751
        %s753 = scalar_lea.vmem [#allocation5], 55
        %v754 = vld [vmem:[%s753] ss:$8 sm:$0x3]
        %v756 = vlaneseq
        %v757 = vshrl.u32 %v756, 7
        %v758 = vsub.s32 0, %v757
        %v759 = vrot.slane %v754, %v758
        %v760 = vlaneseq
        %v761 = vshrl.u32 %v760, 7
        %v762 = vsub.s32 1, %v761
        %v763 = vrot.slane %v754, %v762
        %v766 = vadd.f32 %v731, %v759
        %v767 = vadd.f32 %v732, %v763
        %v768 = vsel %vm201, %v766, -inf
        %v769 = vsel %vm201, %v767, -inf
        %v770 = vmax.f32 %v768, %v769
        %771 = vmax.xlane.f32.xlu0 %v770
        %v772 = vpop.xlane.xlu0 %771
        %s773 = scalar_lea.vmem [#allocation5], 64
        %v774 = vld [vmem:[%s773] ss:$8 sm:$0x3]
        %v776 = vlaneseq
        %v777 = vshrl.u32 %v776, 7
        %v778 = vsub.s32 0, %v777
        %v779 = vrot.slane %v774, %v778
        %v780 = vlaneseq
        %v781 = vshrl.u32 %v780, 7
        %v782 = vsub.s32 1, %v781
        %v783 = vrot.slane %v774, %v782
        %v786 = vadd.f32 %v731, %v779
        %v787 = vadd.f32 %v732, %v783
        %v788 = vsel %vm201, %v786, -inf
        %v789 = vsel %vm201, %v787, -inf
        %v790 = vmax.f32 %v788, %v789
        %791 = vmax.xlane.f32.xlu0 %v790
        %v792 = vpop.xlane.xlu0 %791
        %s793 = scalar_lea.vmem [#allocation5], 65
        %v794 = vld [vmem:[%s793] ss:$8 sm:$0x3]
        %v796 = vlaneseq
        %v797 = vshrl.u32 %v796, 7
        %v798 = vsub.s32 0, %v797
        %v799 = vrot.slane %v794, %v798
        %v800 = vlaneseq
        %v801 = vshrl.u32 %v800, 7
        %v802 = vsub.s32 1, %v801
        %v803 = vrot.slane %v794, %v802
        %v806 = vadd.f32 %v731, %v799
        %v807 = vadd.f32 %v732, %v803
        %v808 = vsel %vm201, %v806, -inf
        %v809 = vsel %vm201, %v807, -inf
        %v810 = vmax.f32 %v808, %v809
        %811 = vmax.xlane.f32.xlu0 %v810
        %v812 = vpop.xlane.xlu0 %811
        %vm813 = vcmask 7168
        %v814 = vsel %vm813, %v752, %v772
        %v815 = vsel %vm483, %v814, %v792
        %vm816 = vcmask 23552
        %v817 = vsel %vm816, %v815, %v812
        %vm818 = vcmask 27648
        %819 = vst.msk [vmem:[%s174] sm:$0xf] %vm818, %v817
        %s820 = sand.u32 %s75, 1
        %s821 = scalar_lea.sflag [#allocation4], %s820
        %s822 = sand.u32 %s75, 1
        %s823 = smul.addr %s822, 4
        %s824 = scalar_lea.vmem [#allocation7], %s823
        // Predicated region
        $region37: #{tpu_custom_call.1} parent=27 // pred_check
          %p825 = pneg %p85
        $region38: #{tpu_custom_call.1} parent=27 // pred_check_branch
          %827 = sbr.rel (%p825) target = $region40
        $region39: #{tpu_custom_call.1} parent=27 // pred_region
          %s829 = ssub.s32 64, 64
          %830 = vsyncadd %s821, %s829
          %s831 = smul.addr %s20, 64
          %s832 = scalar_lea.hbm %s2, %s831
          %s834 = sshll.u32 %s824, 4
          %s835 = int_to_ptr.vmem [resolvable:$true] %s834
          %837 = dma.vmem_to_hbm [thread:$0]  %s835, 64, %s832, %s821
        $region40: #{tpu_custom_call.1} parent=27 // pred_fallthru
          _
      $region28: #{tpu_custom_call.1} parent=5 // pred_fallthru
        _
      %p838 = scmp.le.s32.totalorder 2, %s15
      // Predicated region
      $region41: #{tpu_custom_call.1} parent=5 // pred_check
        %p839 = pneg %p838
      $region42: #{tpu_custom_call.1} parent=5 // pred_check_branch
        %841 = sbr.rel (%p839) target = $region44
      $region43: #{tpu_custom_call.1} parent=5 // pred_region
        %s842 = ssub.s32 %s15, 2
        // Predicated region
        $region45: #{tpu_custom_call.1} parent=43 // pred_check
          %p843 = pneg %p91
        $region46: #{tpu_custom_call.1} parent=43 // pred_check_branch
          %845 = sbr.rel (%p843) target = $region48
        $region47: #{tpu_custom_call.1} parent=43 // pred_region
          %s846 = sand.u32 %s76, 1
          %s847 = scalar_lea.sflag [#allocation4], %s846
          %s848 = sand.u32 %s76, 1
          %s849 = smul.addr %s848, 4
          %s850 = scalar_lea.vmem [#allocation7], %s849
          %851 = dma.done %s847, 64
        $region48: #{tpu_custom_call.1} parent=43 // pred_fallthru
          _
      $region44: #{tpu_custom_call.1} parent=5 // pred_fallthru
        _
    $region6: #{tpu_custom_call.1} parent=1 // loop_footer
      %s19 = sadd.s32 1, %s15
    $region7: #{tpu_custom_call.1} parent=1 // loop_footer_branch
      %14 = sbr.rel target = $region3
    $region8: #{tpu_custom_call.1} parent=1 // loop_exit
      _
    %852 = vsyncpa [#allocation3], 1
    %s853 = scalar_lea.sflag [#allocation3], 1
    %854 = vsyncpa %s853, 1
    %855 = vsyncpa [#allocation6], 1
    %856 = vsyncpa [#allocation4], 1
    %s857 = scalar_lea.sflag [#allocation4], 1
    %858 = vsyncpa %s857, 1

</llo_original>
